<compile_context>
chip_gen: v7x
topology: tpu7x:2x2x1
jax: 0.10.0
libtpu: 0.0.40
codegen_flags: <defaults>
</compile_context>

<pallas_src>
import jax
import jax.numpy as jnp
from jax.experimental import pallas as pl
from jax.experimental.pallas import tpu as pltpu


# ----------------------------------------------------------------------------- kernels


def _mlp_kernel_resident(x_ref, w1_ref, b1_ref, w2_ref, b2_ref, o_ref):
    """Weights fully resident in VMEM: one fused pass per row tile, no scratch."""
    x = x_ref[...]
    # fc1 (MXU, bf16 in / f32 acc) + bias
    h = jnp.dot(x, w1_ref[...], preferred_element_type=jnp.float32) + b1_ref[...]
    # swish / SiLU in the compute dtype (bf16 -> 2 elems/lane on the EUP, v6e/v7x)
    hb = h.astype(w2_ref.dtype)
    act = hb * jax.nn.sigmoid(hb)
    # dropout(p=0.0) is the identity.
    # fc2 (MXU, f32 acc) + bias, single direct store (no accumulator round-trip)
    out = jnp.dot(act, w2_ref[...], preferred_element_type=jnp.float32) + b2_ref[...]
    o_ref[...] = out.astype(o_ref.dtype)


def _mlp_kernel_streamed(x_ref, w1_ref, b1_ref, w2_ref, b2_ref, o_ref, acc_ref):
    """F dimension tiled across the grid (weights streamed from HBM)."""
    f = pl.program_id(1)

    @pl.when(f == 0)
    def _init():
        acc_ref[...] = jnp.zeros_like(acc_ref)

    x = x_ref[...]
    h = jnp.dot(x, w1_ref[...], preferred_element_type=jnp.float32) + b1_ref[...]
    hb = h.astype(w2_ref.dtype)
    act = hb * jax.nn.sigmoid(hb)
    acc_ref[...] += jnp.dot(act, w2_ref[...], preferred_element_type=jnp.float32)

    @pl.when(f == pl.num_programs(1) - 1)
    def _finalize():
        o_ref[...] = (acc_ref[...] + b2_ref[...]).astype(o_ref.dtype)


# ----------------------------------------------------------------------------- tiling helpers


def _round_up(a, b):
    return (a + b - 1) // b * b


def _vmem_limit_bytes():
    """Raise the scoped-VMEM limit according to the chip (default is 16/32 MiB)."""
    try:
        cap = pltpu.get_tpu_info().vmem_capacity_bytes
    except Exception:
        cap = 64 * 1024 * 1024  # conservative: v7x per-TensorCore capacity
    # leave headroom for compiler-internal scratch; cap at 96 MiB (v5e/v6e)
    return int(min(cap * 3 // 4, 96 * 1024 * 1024))


def _vmem_bytes(tm, tf, h, nf, in_bytes, out_bytes):
    """Conservative VMEM footprint estimate (weights always double-buffered)."""
    h_vm = _round_up(h, 128)                 # lane padding of VMEM tiles
    h_sub = _round_up(h, 8)                  # sublane padding
    x_tiles = 2 * tm * h_vm * in_bytes       # double-buffered input tile
    out_tiles = 2 * tm * h_vm * out_bytes    # double-buffered output tile
    acc = (tm * h_vm * 4) if nf > 1 else 0   # f32 accumulator scratch
    weights = 2 * (h_sub * tf + tf * h_vm) * in_bytes
    biases = 2 * 8 * (tf + h_vm) * 4
    inter = tm * tf * (4 + 2 * in_bytes)     # f32 h + bf16 cast/act temporaries
    return x_tiles + out_tiles + acc + weights + biases + inter


def _pick_tiles(m, h, f_pad, budget, in_bytes, out_bytes, forced_tm=None):
    """Largest (tm, tf) that fits the budget; tf always divides f_pad exactly."""
    m8 = _round_up(m, 8)
    ladder = (1024, 512, 256, 128, 64, 32, 16, 8)
    if forced_tm is None:
        tm_cands = [c for c in ladder if c <= m8] or [8]
    else:
        ft = max(8, _round_up(int(forced_tm), 8))
        tm_cands = [ft] + [c for c in ladder if c < ft]

    nlanes = max(1, f_pad // 128)
    tf_cands = sorted(
        {f_pad // nf for nf in range(1, nlanes + 1)
         if f_pad % nf == 0 and (f_pad // nf) % 128 == 0},
        reverse=True)

    for tm in tm_cands:              # prefer large tm (arithmetic intensity)
        for tf in tf_cands:          # within tm, prefer resident weights
            nf = f_pad // tf
            if _vmem_bytes(tm, tf, h, nf, in_bytes, out_bytes) <= budget:
                return tm, tf
    return 8, 128                    # pathological fallback


# ----------------------------------------------------------------------------- weight prep (once per model)


def prepare_mlp_params(w1, b1, w2, b2, *, compute_dtype=jnp.bfloat16):
    """One-time weight preprocessing (hoisted out of the forward path):
    transpose to matmul layout, cast to the MXU dtype, pad F to a multiple of
    128.  Zero padding is exact: padded b1 is 0 so swish(0)=0, and the padded
    w2 rows are 0."""
    Fdim, H = w1.shape
    assert w2.shape == (H, Fdim) and b1.shape == (Fdim,) and b2.shape == (H,)
    F_pad = _round_up(Fdim, 128)
    w1t = jnp.pad(jnp.asarray(w1).T.astype(compute_dtype),
                  ((0, 0), (0, F_pad - Fdim)))
    w2t = jnp.pad(jnp.asarray(w2).T.astype(compute_dtype),
                  ((0, F_pad - Fdim), (0, 0)))
    b1r = jnp.pad(jnp.asarray(b1).astype(jnp.float32)[None, :],
                  ((0, 0), (0, F_pad - Fdim)))
    b2r = jnp.asarray(b2).astype(jnp.float32)[None, :]
    return dict(w1t=w1t, b1r=b1r, w2t=w2t, b2r=b2r,
                H=H, F=Fdim, F_pad=F_pad, compute_dtype=compute_dtype)


# ----------------------------------------------------------------------------- forward


def mlp_forward(x, params, *, tm=None):
    """x: [B, N, H] -> [B, N, H].  `params` from prepare_mlp_params()."""
    B, N, H = x.shape
    assert H == params["H"], "hidden size mismatch"
    compute_dtype = params["compute_dtype"]
    F_pad = params["F_pad"]
    M = B * N
    out_dtype = x.dtype
    in_bytes = jnp.dtype(compute_dtype).itemsize
    out_bytes = jnp.dtype(out_dtype).itemsize

    vmem_limit = _vmem_limit_bytes()
    budget = int(vmem_limit * 0.8)
    tm_sel, tf = _pick_tiles(M, H, F_pad, budget, in_bytes, out_bytes, forced_tm=tm)

    M_pad = _round_up(M, tm_sel)
    n_row = M_pad // tm_sel
    nf = F_pad // tf

    # Per-call activation prep: cast to the MXU dtype and pad rows to the tile
    # (padded rows produce garbage-free zeros and are sliced off below).
    x2 = jnp.pad(x.reshape(M, H).astype(compute_dtype), ((0, M_pad - M), (0, 0)))

    weight_bytes = (params["w1t"].size + params["w2t"].size) * in_bytes
    cost = pl.CostEstimate(
        flops=4 * M_pad * H * F_pad,
        transcendentals=M_pad * F_pad,
        bytes_accessed=(x2.size * in_bytes
                        + weight_bytes * (n_row if nf > 1 else 1)
                        + (params["b1r"].size + params["b2r"].size) * 4
                        + M_pad * H * out_bytes),
    )

    if nf == 1:
        # Weights fully resident: no F grid axis, no accumulator scratch.
        grid_spec = pltpu.PrefetchScalarGridSpec(
            num_scalar_prefetch=0,
            grid=(n_row,),
            in_specs=[
                pl.BlockSpec((tm_sel, H), lambda i: (i, 0)),      # x rows
                pl.BlockSpec((H, F_pad), lambda i: (0, 0)),       # w1 (resident)
                pl.BlockSpec((1, F_pad), lambda i: (0, 0)),       # b1
                pl.BlockSpec((F_pad, H), lambda i: (0, 0)),       # w2 (resident)
                pl.BlockSpec((1, H), lambda i: (0, 0)),           # b2
            ],
            out_specs=pl.BlockSpec((tm_sel, H), lambda i: (i, 0)),
        )
        kernel = _mlp_kernel_resident
        semantics = ("parallel",)
    else:
        # Streamed path (large F / small VMEM, e.g. v7x): F is a reduction axis.
        grid_spec = pltpu.PrefetchScalarGridSpec(
            num_scalar_prefetch=0,
            grid=(n_row, nf),
            in_specs=[
                pl.BlockSpec((tm_sel, H), lambda i, f: (i, 0)),   # x rows
                pl.BlockSpec((H, tf), lambda i, f: (0, f)),       # w1 chunk
                pl.BlockSpec((1, tf), lambda i, f: (0, f)),       # b1 chunk
                pl.BlockSpec((tf, H), lambda i, f: (f, 0)),       # w2 chunk
                pl.BlockSpec((1, H), lambda i, f: (0, 0)),        # b2
            ],
            out_specs=pl.BlockSpec((tm_sel, H), lambda i, f: (i, 0)),
            scratch_shapes=[pltpu.VMEM((tm_sel, H), jnp.float32)],
        )
        kernel = _mlp_kernel_streamed
        semantics = ("parallel", "arbitrary")

    out = pl.pallas_call(
        kernel,
        out_shape=jax.ShapeDtypeStruct((M_pad, H), out_dtype),
        grid_spec=grid_spec,
        compiler_params=pltpu.CompilerParams(
            dimension_semantics=semantics, vmem_limit_bytes=vmem_limit),
        cost_estimate=cost,
    )(x2, params["w1t"], params["b1r"], params["w2t"], params["b2r"])

    return out[:M].reshape(B, N, H)


# ----------------------------------------------------------------------------- reference & test


def reference_mlp(x, w1, b1, w2, b2):
    h = jnp.einsum("bnh,fh->bnf", x, w1) + b1
    h = h * jax.nn.sigmoid(h)
    return jnp.einsum("bnf,hf->bnh", h, w2) + b2


if __name__ == "__main__":
    # Small shapes consistent with the module: hidden_size=32 -> hidden_features=128
    B, N, H = 2, 8, 32
    Fdim = H * 4

    key = jax.random.PRNGKey(0)
    kx, k1, k2, k3, k4 = jax.random.split(key, 5)

    x = jax.random.normal(kx, (B, N, H), dtype=jnp.float32)
    # deterministic synthetic parameters (PyTorch Linear layout: [out, in])
    w1 = jax.random.normal(k1, (Fdim, H), dtype=jnp.float32) * 0.02
    b1 = jax.random.normal(k2, (Fdim,), dtype=jnp.float32) * 0.02
    w2 = jax.random.normal(k3, (H, Fdim), dtype=jnp.float32) * 0.02
    b2 = jax.random.normal(k4, (H,), dtype=jnp.float32) * 0.02

    params = prepare_mlp_params(w1, b1, w2, b2)   # one-time weight prep
    y = jax.block_until_ready(mlp_forward(x, params))

    y_ref = reference_mlp(x, w1, b1, w2, b2)
    assert y.shape == (B, N, H)
    # bf16 MXU operands / bf16 swish (f32 accumulation) vs all-f32 reference
    assert jnp.allclose(y, y_ref, atol=2e-2, rtol=2e-2), "mismatch vs reference"

    print("KERNEL_OK")
</pallas_src>

<mosaic_0001>
module attributes {stable_mosaic.version = 11 : i64} {
  func.func @_mlp_kernel_resident(%arg0: i32, %arg1: memref<16x32xbf16, #tpu.memory_space<vmem>>, %arg2: memref<32x128xbf16, #tpu.memory_space<vmem>>, %arg3: memref<1x128xf32, #tpu.memory_space<vmem>>, %arg4: memref<128x32xbf16, #tpu.memory_space<vmem>>, %arg5: memref<1x32xf32, #tpu.memory_space<vmem>>, %arg6: memref<16x32xf32, #tpu.memory_space<vmem>>) attributes {dimension_semantics = [#tpu.dimension_semantics<parallel>], iteration_bounds = array<i64: 1>, scalar_prefetch = 0 : i64, scratch_operands = 0 : i64, tpu.core_type = #tpu.core_type<tc>, window_params = [{transform_indices = @transform_0, window_bounds = array<i64: 16, 32>}, {pipeline_mode = #tpu.pipeline_mode<synchronous>, transform_indices = @transform_1, window_bounds = array<i64: 32, 128>}, {pipeline_mode = #tpu.pipeline_mode<synchronous>, transform_indices = @transform_2, window_bounds = array<i64: 1, 128>}, {pipeline_mode = #tpu.pipeline_mode<synchronous>, transform_indices = @transform_3, window_bounds = array<i64: 128, 32>}, {pipeline_mode = #tpu.pipeline_mode<synchronous>, transform_indices = @transform_4, window_bounds = array<i64: 1, 32>}, {transform_indices = @transform_5, window_bounds = array<i64: 16, 32>}]} {
    %c0 = arith.constant 0 : index
    %c0_0 = arith.constant 0 : index
    %0 = vector.load %arg1[%c0, %c0_0] : memref<16x32xbf16, #tpu.memory_space<vmem>>, vector<16x32xbf16>
    %c0_1 = arith.constant 0 : index
    %c0_2 = arith.constant 0 : index
    %1 = vector.load %arg2[%c0_1, %c0_2] : memref<32x128xbf16, #tpu.memory_space<vmem>>, vector<32x128xbf16>
    %cst = arith.constant dense<0.000000e+00> : vector<16x128xf32>
    %2 = tpu.matmul %0, %1, %cst {dimension_numbers = #tpu.dot_dimension_numbers<[1], [0], [0], [1], [0, 0, 1, 1], [], []>} : vector<16x32xbf16>, vector<32x128xbf16>, vector<16x128xf32> -> vector<16x128xf32>
    %c0_3 = arith.constant 0 : index
    %c0_4 = arith.constant 0 : index
    %3 = vector.load %arg3[%c0_3, %c0_4] : memref<1x128xf32, #tpu.memory_space<vmem>>, vector<1x128xf32>
    %4 = vector.broadcast %3 : vector<1x128xf32> to vector<16x128xf32>
    %5 = arith.addf %2, %4 : vector<16x128xf32>
    %6 = arith.truncf %5 : vector<16x128xf32> to vector<16x128xbf16>
    %7 = arith.negf %6 : vector<16x128xbf16>
    %8 = math.exp %7 : vector<16x128xbf16>
    %cst_5 = arith.constant 1.000000e+00 : bf16
    %9 = vector.broadcast %cst_5 : bf16 to vector<16x128xbf16>
    %10 = arith.addf %9, %8 : vector<16x128xbf16>
    %11 = arith.divf %9, %10 : vector<16x128xbf16>
    %12 = arith.mulf %6, %11 : vector<16x128xbf16>
    %c0_6 = arith.constant 0 : index
    %c0_7 = arith.constant 0 : index
    %13 = vector.load %arg4[%c0_6, %c0_7] : memref<128x32xbf16, #tpu.memory_space<vmem>>, vector<128x32xbf16>
    %cst_8 = arith.constant dense<0.000000e+00> : vector<16x32xf32>
    %14 = tpu.matmul %12, %13, %cst_8 {dimension_numbers = #tpu.dot_dimension_numbers<[1], [0], [0], [1], [0, 0, 1, 1], [], []>} : vector<16x128xbf16>, vector<128x32xbf16>, vector<16x32xf32> -> vector<16x32xf32>
    %c0_9 = arith.constant 0 : index
    %c0_10 = arith.constant 0 : index
    %15 = vector.load %arg5[%c0_9, %c0_10] : memref<1x32xf32, #tpu.memory_space<vmem>>, vector<1x32xf32>
    %16 = vector.broadcast %15 : vector<1x32xf32> to vector<16x32xf32>
    %17 = arith.addf %14, %16 : vector<16x32xf32>
    %c0_11 = arith.constant 0 : index
    %c0_12 = arith.constant 0 : index
    %18 = vector.load %arg6[%c0_11, %c0_12] : memref<16x32xf32, #tpu.memory_space<vmem>>, vector<16x32xf32>
    tpu.vector_store %arg6[%c0_11, %c0_12], %17 {strides = array<i32>} : memref<16x32xf32, #tpu.memory_space<vmem>>, vector<16x32xf32>,
    return
  }
  func.func @transform_0(%arg0: i32) -> (i32, i32) {
    %c0_i32 = arith.constant 0 : i32
    %c0_i32_0 = arith.constant 0 : i32
    return %arg0, %c0_i32 : i32, i32
  }
  func.func @transform_1(%arg0: i32) -> (i32, i32) {
    %c0_i32 = arith.constant 0 : i32
    %c0_i32_0 = arith.constant 0 : i32
    %c0_i32_1 = arith.constant 0 : i32
    return %c0_i32, %c0_i32_0 : i32, i32
  }
  func.func @transform_2(%arg0: i32) -> (i32, i32) {
    %c0_i32 = arith.constant 0 : i32
    %c0_i32_0 = arith.constant 0 : i32
    %c0_i32_1 = arith.constant 0 : i32
    return %c0_i32, %c0_i32_0 : i32, i32
  }
  func.func @transform_3(%arg0: i32) -> (i32, i32) {
    %c0_i32 = arith.constant 0 : i32
    %c0_i32_0 = arith.constant 0 : i32
    %c0_i32_1 = arith.constant 0 : i32
    return %c0_i32, %c0_i32_0 : i32, i32
  }
  func.func @transform_4(%arg0: i32) -> (i32, i32) {
    %c0_i32 = arith.constant 0 : i32
    %c0_i32_0 = arith.constant 0 : i32
    %c0_i32_1 = arith.constant 0 : i32
    return %c0_i32, %c0_i32_0 : i32, i32
  }
  func.func @transform_5(%arg0: i32) -> (i32, i32) {
    %c0_i32 = arith.constant 0 : i32
    %c0_i32_0 = arith.constant 0 : i32
    return %arg0, %c0_i32 : i32, i32
  }
}

</mosaic_0001>

<llo_original>
// kernel: tpu_custom_call.1
$region0: #{tpu_custom_call.1}
  #allocation0 [shape = 'u32[]', space=smem, size = 0x4, offset = 0x4, fixed_abs, tag = 'smem constant byte address 0x4 - core index']
  #allocation1 [shape = 'u32[144,128]{1,0:T(1,128)}', space=vmem, size = 0x12000, scoped, tag = 'internal scratch']
  %s0 = inlined_call_operand.vmem [shape: bf16[16,32], index: 0, kind: input, shape index: {}]
  %s1 = inlined_call_operand.vmem [shape: bf16[32,128], index: 1, kind: input, shape index: {}]
  %s2 = inlined_call_operand.vmem [shape: f32[1,128], index: 2, kind: input, shape index: {}]
  %s3 = inlined_call_operand.vmem [shape: bf16[128,32], index: 3, kind: input, shape index: {}]
  %s4 = inlined_call_operand.vmem [shape: f32[1,32], index: 4, kind: input, shape index: {}]
  %s5 = inlined_call_operand.hbm [shape: f32[16,32], index: 5, kind: output, shape index: {}]
  %s6 = sld [smem:[#allocation0]]
  $region30: #{tpu_custom_call.1} parent=0
    _
  %s8 = ssub.s32 1, %s6
  %s9 = scalar_select 0, %s8, %s6
  $region1: #{tpu_custom_call.1} parent=0
    #allocation2 [shape = 'u8[8192]{0}', space=vmem, size = 0x2000, scoped, tag = 'output window, operand 0, single buffered']
    #allocation3 [shape = 's32[1]{0}', space=sflag, size = 0x4, scoped, tag = 'scoped memory for tpu_custom_call.1']
    %10 = vsyncpa [#allocation3], 0
    // Predicated region
    $region2: #{tpu_custom_call.1} parent=1 // pred_check
      _
    $region3: #{tpu_custom_call.1} parent=1 // pred_check_branch
      %12 = sbr.rel (0) target = $region5
    $region4: #{tpu_custom_call.1} parent=1 // pred_region
      _
    $region5: #{tpu_custom_call.1} parent=1 // pred_fallthru
      _
    // Predicated region
    $region6: #{tpu_custom_call.1} parent=1 // pred_check
      _
    $region7: #{tpu_custom_call.1} parent=1 // pred_check_branch
      %14 = sbr.rel (0) target = $region9
    $region8: #{tpu_custom_call.1} parent=1 // pred_region
      _
    $region9: #{tpu_custom_call.1} parent=1 // pred_fallthru
      _
    // Predicated region
    $region10: #{tpu_custom_call.1} parent=1 // pred_check
      _
    $region11: #{tpu_custom_call.1} parent=1 // pred_check_branch
      %16 = sbr.rel (0) target = $region13
    $region12: #{tpu_custom_call.1} parent=1 // pred_region
      _
    $region13: #{tpu_custom_call.1} parent=1 // pred_fallthru
      _
    // Predicated region
    $region14: #{tpu_custom_call.1} parent=1 // pred_check
      _
    $region15: #{tpu_custom_call.1} parent=1 // pred_check_branch
      %18 = sbr.rel (0) target = $region17
    $region16: #{tpu_custom_call.1} parent=1 // pred_region
      _
    $region17: #{tpu_custom_call.1} parent=1 // pred_fallthru
      _
    // Predicated region
    $region18: #{tpu_custom_call.1} parent=1 // pred_check
      _
    $region19: #{tpu_custom_call.1} parent=1 // pred_check_branch
      %20 = sbr.rel (0) target = $region21
    $region20: #{tpu_custom_call.1} parent=1 // pred_region
      _
    $region21: #{tpu_custom_call.1} parent=1 // pred_fallthru
      _
    %v23 = vld [vmem:[%s0] sm:$0xf]
    %v24 = vld [vmem:[%s0 + $0x4] sm:$0xf]
    %v25 = vld [vmem:[%s1] sm:$0xf]
    %v26 = vld [vmem:[%s1 + $0x4] sm:$0xf]
    %v27 = vld [vmem:[%s1 + $0x8] sm:$0xf]
    %v28 = vld [vmem:[%s1 + $0xc] sm:$0xf]
    %v29 = vld [vmem:[%s2] sm:$0x1]
    %v31 = vlaneseq
    %v32 = vshrl.u32 %v31, 7
    %v33 = vsub.s32 0, %v32
    %v34 = vrot.slane %v29, %v33
    %v38 = vunpack.c.l.b16 %v23
    %v39 = vunpack.c.l.b16 %v24
    %v40 = vpack.c.b16 %v39, %v38
    %v45 = vunpack.c.l.b16 %v25
    %v46 = vunpack.c.l.b16 %v26
    %v47 = vunpack.c.l.b16 %v27
    %v48 = vunpack.c.l.b16 %v28
    %v49 = vpack.c.b16 %v46, %v45
    %v50 = vpack.c.b16 %v48, %v47
    %vm53 = vcmask 261120
    %v55 = vsel %vm53, %v40, 0
    %57 = vmatprep.subr.bf16.mxu0 0
    %58 = vmatpush1.bf16.msra.mxu0 %v49
    %59 = vmatprep.subr.bf16.mxu0 0
    %60 = vmatpush1.bf16.msra.mxu0 %v50
    %61 = vmatprep.subr.bf16.mxu0 0
    %62 = vmatpush1.bf16.msra.mxu0 0
    %63 = vmatprep.subr.bf16.mxu0 0
    %64 = vmatpush1.bf16.msra.mxu0 0
    %65 = vmatprep.subr.bf16.mxu0 0
    %66 = vmatpush1.bf16.msra.mxu0 0
    %67 = vmatprep.subr.bf16.mxu0 0
    %68 = vmatpush1.bf16.msra.mxu0 0
    %69 = vmatprep.subr.bf16.mxu0 0
    %70 = vmatpush1.bf16.msra.mxu0 0
    %71 = vmatprep.subr.bf16.mxu0 0
    %72 = vmatpush1.bf16.msra.mxu0 0
    %73 = vmatprep.subr.bf16.mxu0 0
    %74 = vmatpush1.bf16.msra.mxu0 0
    %75 = vmatprep.subr.bf16.mxu0 0
    %76 = vmatpush1.bf16.msra.mxu0 0
    %77 = vmatprep.subr.bf16.mxu0 0
    %78 = vmatpush1.bf16.msra.mxu0 0
    %79 = vmatprep.subr.bf16.mxu0 0
    %80 = vmatpush1.bf16.msra.mxu0 0
    %81 = vmatprep.subr.bf16.mxu0 0
    %82 = vmatpush1.bf16.msra.mxu0 0
    %83 = vmatprep.subr.bf16.mxu0 0
    %84 = vmatpush1.bf16.msra.mxu0 0
    %85 = vmatprep.subr.bf16.mxu0 0
    %86 = vmatpush1.bf16.msra.mxu0 0
    %87 = vmatprep.subr.bf16.mxu0 0
    %88 = vmatpush1.bf16.msra.mxu0 0
    %89 = vmatprep.mubr.bf16.mxu0 0
    %90 = vmatmul.mubr.bf16.gmra.mrb[0].mxu0 %v55
    %v91 = vpop.f32.mrb[0].mxu0
    %v92 = vadd.f32 %v34, %v91
    %v93 = vpop.f32.mrb[0].mxu0
    %v94 = vpop.f32.mrb[0].mxu0
    %v95 = vadd.f32 %v34, %v94
    %v96 = vpop.f32.mrb[0].mxu0
    %97 = vdwg.mxu0
    %v98 = vpack.c.bf16 %v95, %v92
    %v99 = vxor.u32 %v98, 2147516416
    %v101 = vmul.bf16 %v99, 1069105081
    %v102 = vpow.bf16.pop %v101
    %v103 = vadd.bf16 %v102, 1065369472
    %v104 = vrcp.bf16.pop %v103
    %v105 = vmul.bf16 1065369472, %v104
    %v106 = vmul.bf16 %v98, %v105
    %v107 = vld [vmem:[%s3] sm:$0xf]
    %v108 = vld [vmem:[%s3 + $0x4] sm:$0xf]
    %v109 = vld [vmem:[%s3 + $0x8] sm:$0xf]
    %v110 = vld [vmem:[%s3 + $0xc] sm:$0xf]
    %v111 = vld [vmem:[%s3 + $0x10] sm:$0xf]
    %v112 = vld [vmem:[%s3 + $0x14] sm:$0xf]
    %v113 = vld [vmem:[%s3 + $0x18] sm:$0xf]
    %v114 = vld [vmem:[%s3 + $0x1c] sm:$0xf]
    %v115 = vld [vmem:[%s3 + $0x20] sm:$0xf]
    %v116 = vld [vmem:[%s3 + $0x24] sm:$0xf]
    %v117 = vld [vmem:[%s3 + $0x28] sm:$0xf]
    %v118 = vld [vmem:[%s3 + $0x2c] sm:$0xf]
    %v119 = vld [vmem:[%s3 + $0x30] sm:$0xf]
    %v120 = vld [vmem:[%s3 + $0x34] sm:$0xf]
    %v121 = vld [vmem:[%s3 + $0x38] sm:$0xf]
    %v122 = vld [vmem:[%s3 + $0x3c] sm:$0xf]
    %v123 = vld [vmem:[%s4] sm:$0x1]
    %v125 = vlaneseq
    %v126 = vshrl.u32 %v125, 7
    %v127 = vsub.s32 0, %v126
    %v128 = vrot.slane %v123, %v127
    %v146 = vunpack.c.l.b16 %v107
    %v147 = vunpack.c.l.b16 %v108
    %v148 = vunpack.c.l.b16 %v109
    %v149 = vunpack.c.l.b16 %v110
    %v150 = vunpack.c.l.b16 %v111
    %v151 = vunpack.c.l.b16 %v112
    %v152 = vunpack.c.l.b16 %v113
    %v153 = vunpack.c.l.b16 %v114
    %v154 = vunpack.c.l.b16 %v115
    %v155 = vunpack.c.l.b16 %v116
    %v156 = vunpack.c.l.b16 %v117
    %v157 = vunpack.c.l.b16 %v118
    %v158 = vunpack.c.l.b16 %v119
    %v159 = vunpack.c.l.b16 %v120
    %v160 = vunpack.c.l.b16 %v121
    %v161 = vunpack.c.l.b16 %v122
    %v162 = vpack.c.b16 %v147, %v146
    %v163 = vpack.c.b16 %v149, %v148
    %v164 = vpack.c.b16 %v151, %v150
    %v165 = vpack.c.b16 %v153, %v152
    %v166 = vpack.c.b16 %v155, %v154
    %v167 = vpack.c.b16 %v157, %v156
    %v168 = vpack.c.b16 %v159, %v158
    %v169 = vpack.c.b16 %v161, %v160
    %178 = vmatprep.subr.bf16.mxu0 0
    %179 = vmatpush1.bf16.msra.mxu0 %v162
    %180 = vmatprep.subr.bf16.mxu0 0
    %181 = vmatpush1.bf16.msra.mxu0 %v163
    %182 = vmatprep.subr.bf16.mxu0 0
    %183 = vmatpush1.bf16.msra.mxu0 %v164
    %184 = vmatprep.subr.bf16.mxu0 0
    %185 = vmatpush1.bf16.msra.mxu0 %v165
    %186 = vmatprep.subr.bf16.mxu0 0
    %187 = vmatpush1.bf16.msra.mxu0 %v166
    %188 = vmatprep.subr.bf16.mxu0 0
    %189 = vmatpush1.bf16.msra.mxu0 %v167
    %190 = vmatprep.subr.bf16.mxu0 0
    %191 = vmatpush1.bf16.msra.mxu0 %v168
    %192 = vmatprep.subr.bf16.mxu0 0
    %193 = vmatpush1.bf16.msra.mxu0 %v169
    %194 = vmatprep.subr.bf16.mxu0 0
    %195 = vmatpush1.bf16.msra.mxu0 0
    %196 = vmatprep.subr.bf16.mxu0 0
    %197 = vmatpush1.bf16.msra.mxu0 0
    %198 = vmatprep.subr.bf16.mxu0 0
    %199 = vmatpush1.bf16.msra.mxu0 0
    %200 = vmatprep.subr.bf16.mxu0 0
    %201 = vmatpush1.bf16.msra.mxu0 0
    %202 = vmatprep.subr.bf16.mxu0 0
    %203 = vmatpush1.bf16.msra.mxu0 0
    %204 = vmatprep.subr.bf16.mxu0 0
    %205 = vmatpush1.bf16.msra.mxu0 0
    %206 = vmatprep.subr.bf16.mxu0 0
    %207 = vmatpush1.bf16.msra.mxu0 0
    %208 = vmatprep.subr.bf16.mxu0 0
    %209 = vmatpush1.bf16.msra.mxu0 0
    %210 = vmatprep.mubr.bf16.mxu0 0
    %211 = vmatmul.mubr.bf16.gmra.mrb[0].mxu0 %v106
    %v212 = vpop.f32.mrb[0].mxu0
    %v213 = vadd.f32 %v128, %v212
    %v214 = vpop.f32.mrb[0].mxu0
    %v215 = vpop.f32.mrb[0].mxu0
    %v216 = vadd.f32 %v128, %v215
    %v217 = vpop.f32.mrb[0].mxu0
    %218 = vdwg.mxu0
    %219 = vst.msk [vmem:[#allocation2] sm:$0xff] %vm53, %v213
    %220 = vst.msk [vmem:[#allocation2 + $0x8] sm:$0xff] %vm53, %v216
    // Predicated region
    $region22: #{tpu_custom_call.1} parent=1 // pred_check
      _
    $region23: #{tpu_custom_call.1} parent=1 // pred_check_branch
      %222 = sbr.rel (0) target = $region25
    $region24: #{tpu_custom_call.1} parent=1 // pred_region
      %s224 = ssub.s32 256, 256
      %225 = vsyncadd [#allocation3], %s224
      %s226 = sshll.u32 [#allocation2], 4
      %s227 = int_to_ptr.vmem [resolvable:$true] %s226
      %232 = dma.vmem_to_hbm [thread:$0]  %s227, 256, %s5, [#allocation3], 128, 128, 8
    $region25: #{tpu_custom_call.1} parent=1 // pred_fallthru
      _
    // Predicated region
    $region26: #{tpu_custom_call.1} parent=1 // pred_check
      _
    $region27: #{tpu_custom_call.1} parent=1 // pred_check_branch
      %234 = sbr.rel (0) target = $region29
    $region28: #{tpu_custom_call.1} parent=1 // pred_region
      %235 = dma.done [#allocation3], 256
    $region29: #{tpu_custom_call.1} parent=1 // pred_fallthru
      _
    %236 = vsyncpa [#allocation3], 1

</llo_original>
